<compile_context>
chip_gen: v7x
topology: tpu7x:2x2x1
jax: 0.10.0
libtpu: 0.0.40
codegen_flags: <defaults>
</compile_context>

<pallas_src>
import functools

import jax
import jax.numpy as jnp
from jax.experimental import pallas as pl
from jax.experimental.pallas import tpu as pltpu


# ---------------------------------------------------------------------------
# Helpers
# ---------------------------------------------------------------------------
def _pick_tile(dim, max_tile, quantum):
    """Largest tile <= max_tile that is a multiple of `quantum` and divides
    `dim` exactly; falls back to the full dimension (always a legal block)."""
    if dim <= max_tile:
        return dim
    t = (max_tile // quantum) * quantum
    while t >= quantum:
        if dim % t == 0:
            return t
        t -= quantum
    return dim


def _tpu_config():
    """Generation-aware tiling / VMEM budgets (conservative, compile-safe)."""
    kind = ""
    try:
        kind = jax.devices()[0].device_kind.lower()
    except Exception:
        pass
    if "7" in kind:
        # v7x-like: 2 TensorCores/chip, only 64 MiB VMEM per TC.
        return dict(split_rows=True, row_tile_max=256, hw_tile_max=2048,
                    vmem_limit=48 * 1024 * 1024,
                    fused_x_bytes_max=8 * 1024 * 1024)
    # v5e / v6e (and older): 1 TC per device view, 128 MiB VMEM.
    return dict(split_rows=False, row_tile_max=512, hw_tile_max=4096,
                vmem_limit=72 * 1024 * 1024,
                fused_x_bytes_max=14 * 1024 * 1024)


def _pad_cols_to_128(x_rows, hw):
    """Zero-pad the trailing (lane) axis up to a multiple of 128."""
    hwp = ((hw + 127) // 128) * 128
    if hwp != hw:
        x_rows = jnp.pad(x_rows, ((0, 0), (0, hwp - hw)))
    return x_rows, hwp


# ---------------------------------------------------------------------------
# Fully fused path: pool + gate + scale in one kernel (x resident in VMEM).
# The (BC,1)<->(B,C) relayouts are done with tiny selection matmuls:
#   h  = relu( L @ (pooled_rows * W1_exp) )        # == pooled_bc @ w1.T
#   y  = sigmoid(h @ w2.T)                         # (B, C)
#   y_rows = sum_lanes( (L^T @ y) * mask )         # back to (BC, 1)
# ---------------------------------------------------------------------------
def _fused_kernel(x_ref, w1e_ref, w2t_ref, l_ref, lt_ref, mask_ref, o_ref,
                  *, inv_hw):
    x = x_ref[...]                                                   # (BC, HWp)
    s = jnp.sum(x.astype(jnp.float32), axis=1, keepdims=True) * inv_hw  # (BC,1)
    h = jnp.dot(l_ref[...], s * w1e_ref[...],
                preferred_element_type=jnp.float32)                  # (B, hid)
    h = jnp.maximum(h, 0.0)
    y = jax.nn.sigmoid(jnp.dot(h, w2t_ref[...],
                               preferred_element_type=jnp.float32))  # (B, C)
    y_full = jnp.dot(lt_ref[...], y,
                     preferred_element_type=jnp.float32)             # (BC, C)
    y_rows = jnp.sum(y_full * mask_ref[...], axis=1, keepdims=True)  # (BC, 1)
    o_ref[...] = x * y_rows.astype(o_ref.dtype)


# ---------------------------------------------------------------------------
# Pass 1: global average pool as a streaming sum.
# VPU-only elementwise accumulation into a (rt, 128) f32 scratch per step;
# the single XLU lane-reduce (and *1/HW) only happens in the final epilogue.
# ---------------------------------------------------------------------------
def _pool_sum_kernel(x_ref, pooled_ref, acc_ref, *, inv_hw, lane_groups):
    j = pl.program_id(1)

    @pl.when(j == 0)
    def _():
        acc_ref[...] = jnp.zeros_like(acc_ref)

    for g in range(lane_groups):                      # static unroll, pure VPU
        acc_ref[...] += x_ref[:, g * 128:(g + 1) * 128].astype(jnp.float32)

    @pl.when(j == pl.num_programs(1) - 1)
    def _():
        pooled_ref[...] = jnp.sum(acc_ref[...], axis=1, keepdims=True) * inv_hw


# ---------------------------------------------------------------------------
# Pass 2 (streaming path): pure memory-bound channel-wise scale.
# ---------------------------------------------------------------------------
def _scale_kernel(x_ref, y_ref, o_ref):
    o_ref[...] = x_ref[...] * y_ref[...]


# ---------------------------------------------------------------------------
# Wrapper
# ---------------------------------------------------------------------------
def se_layer(x_nchw, w1, w2, *, force_path=None):
    """x: (B,C,H,W); w1: (C//r, C); w2: (C, C//r) (nn.Linear weights, no bias)."""
    B, C, H, W = x_nchw.shape
    HW = H * W
    BC = B * C
    dtype = x_nchw.dtype
    itemsize = jnp.dtype(dtype).itemsize
    cfg = _tpu_config()

    x_rows = x_nchw.reshape(BC, HW)
    x_rows, HWp = _pad_cols_to_128(x_rows, HW)        # lane-dense, sum-safe
    inv_hw = 1.0 / HW                                 # true HW, not padded
    bytes_x = BC * HWp * itemsize

    use_fused = (force_path == "fused") or (
        force_path is None and bytes_x <= cfg["fused_x_bytes_max"])
    if force_path == "stream":
        use_fused = False

    if use_fused:
        hid = w1.shape[0]
        w1e = jnp.tile(w1.T.astype(jnp.float32), (B, 1))             # (BC, hid)
        w2t = w2.T.astype(jnp.float32)                               # (hid, C)
        rows = jnp.arange(BC)
        l_mat = (rows[None, :] // C == jnp.arange(B)[:, None]
                 ).astype(jnp.float32)                               # (B, BC)
        lt_mat = l_mat.T                                             # (BC, B)
        mask = (rows[:, None] % C == jnp.arange(C)[None, :]
                ).astype(jnp.float32)                                # (BC, C)

        vmem_spec = pl.BlockSpec(memory_space=pltpu.MemorySpace.VMEM)
        out_rows = pl.pallas_call(
            functools.partial(_fused_kernel, inv_hw=inv_hw),
            out_shape=jax.ShapeDtypeStruct((BC, HWp), dtype),
            in_specs=[vmem_spec] * 6,
            out_specs=vmem_spec,
            compiler_params=pltpu.CompilerParams(
                vmem_limit_bytes=cfg["vmem_limit"]),
            cost_estimate=pl.CostEstimate(
                flops=2 * BC * HWp + 4 * B * C * max(1, hid),
                transcendentals=B * C,
                bytes_accessed=2 * BC * HWp * itemsize),
        )(x_rows, w1e, w2t, l_mat, lt_mat, mask)

        out_rows = out_rows[:, :HW] if HWp != HW else out_rows
        return out_rows.reshape(B, C, H, W)

    # --------------------- streaming (two-pass) path -------------------------
    # Row-tile quantum matches packed sublane tiling for the dtype.
    row_quantum = max(8, 32 // itemsize)
    row_cap = cfg["row_tile_max"]
    if cfg["split_rows"] and BC >= 2 * row_quantum:
        # v7x: aim for >=2 parallel row steps so both TensorCores get work.
        row_cap = min(row_cap,
                      max(row_quantum, ((BC // 2) // row_quantum) * row_quantum))
    rt = _pick_tile(BC, row_cap, row_quantum)
    ht = _pick_tile(HWp, cfg["hw_tile_max"], 128)     # HWp % 128 == 0 always

    # VMEM guard: keep the worst-case double-buffered working set of the
    # streaming passes well under the scoped limit (matters most on v7x).
    budget = int(0.45 * cfg["vmem_limit"])
    while 4 * rt * ht * itemsize > budget and ht > 128:
        new_ht = _pick_tile(HWp, ht - 128, 128)
        if new_ht >= ht:
            break
        ht = new_ht
    # TODO(synk): if BC has no clean multiple-of-quantum divisor, rt may end up
    # pathologically small/large; row padding (in units of C) would fix that.

    n_rows = BC // rt
    n_hw = HWp // ht

    # ---- pass 1: pooled = mean(x, spatial) as a tiled streaming sum ---------
    pooled = pl.pallas_call(
        functools.partial(_pool_sum_kernel, inv_hw=inv_hw,
                          lane_groups=ht // 128),
        out_shape=jax.ShapeDtypeStruct((BC, 1), jnp.float32),
        grid_spec=pltpu.PrefetchScalarGridSpec(
            num_scalar_prefetch=0,
            grid=(n_rows, n_hw),
            in_specs=[pl.BlockSpec((rt, ht), lambda i, j: (i, j))],
            out_specs=pl.BlockSpec((rt, 1), lambda i, j: (i, 0)),
            scratch_shapes=[pltpu.VMEM((rt, 128), jnp.float32)],
        ),
        compiler_params=pltpu.CompilerParams(
            dimension_semantics=("parallel", "arbitrary"),
            vmem_limit_bytes=cfg["vmem_limit"],
        ),
        cost_estimate=pl.CostEstimate(
            flops=BC * HWp, transcendentals=0,
            bytes_accessed=BC * HWp * itemsize + BC * 4),
    )(x_rows)

    # ---- gate in plain jnp (tiny; XLA handles it, no extra kernel launch) ---
    pooled_bc = pooled.reshape(B, C)
    h = jnp.maximum(jnp.dot(pooled_bc, w1.astype(jnp.float32).T,
                            preferred_element_type=jnp.float32), 0.0)
    y = jax.nn.sigmoid(jnp.dot(h, w2.astype(jnp.float32).T,
                               preferred_element_type=jnp.float32))
    y_rows = y.astype(dtype).reshape(BC, 1)

    # ---- pass 2: out = x * y[row]  (pure streaming, fully parallel grid) ----
    out_rows = pl.pallas_call(
        _scale_kernel,
        out_shape=jax.ShapeDtypeStruct((BC, HWp), dtype),
        grid_spec=pltpu.PrefetchScalarGridSpec(
            num_scalar_prefetch=0,
            grid=(n_rows, n_hw),
            in_specs=[pl.BlockSpec((rt, ht), lambda i, j: (i, j)),
                      pl.BlockSpec((rt, 1), lambda i, j: (i, 0))],
            out_specs=pl.BlockSpec((rt, ht), lambda i, j: (i, j)),
        ),
        compiler_params=pltpu.CompilerParams(
            dimension_semantics=("parallel", "parallel"),
            vmem_limit_bytes=cfg["vmem_limit"],
        ),
        cost_estimate=pl.CostEstimate(
            flops=BC * HWp, transcendentals=0,
            bytes_accessed=2 * BC * HWp * itemsize + BC * itemsize),
    )(x_rows, y_rows)

    out_rows = out_rows[:, :HW] if HWp != HW else out_rows
    return out_rows.reshape(B, C, H, W)


if __name__ == "__main__":
    # Shapes consistent with SELayer(channel=32, reduction=16).
    B, C, H, W = 2, 32, 16, 16
    reduction = 16
    hidden = C // reduction  # 2

    key = jax.random.PRNGKey(0)
    kx, k1, k2 = jax.random.split(key, 3)
    x = jax.random.normal(kx, (B, C, H, W), dtype=jnp.float32)
    # nn.Linear weights: (out_features, in_features), no bias.
    w1 = jax.random.normal(k1, (hidden, C), dtype=jnp.float32) * 0.1
    w2 = jax.random.normal(k2, (C, hidden), dtype=jnp.float32) * 0.1

    # Plain-JAX reference (same math as the PyTorch forward).
    pooled_ref = jnp.mean(x, axis=(2, 3))                       # (B, C)
    y_ref = jax.nn.sigmoid(jnp.maximum(pooled_ref @ w1.T, 0.0) @ w2.T)
    ref = x * y_ref[:, :, None, None]

    out_fused = jax.block_until_ready(
        jax.jit(functools.partial(se_layer, force_path="fused"))(x, w1, w2))
    out_stream = jax.block_until_ready(
        jax.jit(functools.partial(se_layer, force_path="stream"))(x, w1, w2))

    assert jnp.allclose(out_fused, ref, atol=1e-5, rtol=1e-5), "fused mismatch"
    assert jnp.allclose(out_stream, ref, atol=1e-5, rtol=1e-5), "stream mismatch"
    print("KERNEL_OK")
</pallas_src>

<mosaic_0001>
module attributes {stable_mosaic.version = 11 : i64} {
  func.func @_fused_kernel(%arg0: memref<64x256xf32, #tpu.memory_space<vmem>>, %arg1: memref<64x2xf32, #tpu.memory_space<vmem>>, %arg2: memref<2x32xf32, #tpu.memory_space<vmem>>, %arg3: memref<2x64xf32, #tpu.memory_space<vmem>>, %arg4: memref<64x2xf32, #tpu.memory_space<vmem>>, %arg5: memref<64x32xf32, #tpu.memory_space<vmem>>, %arg6: memref<64x256xf32, #tpu.memory_space<vmem>>) attributes {dimension_semantics = [], scalar_prefetch = 0 : i64, scratch_operands = 0 : i64, tpu.core_type = #tpu.core_type<tc>} {
    %c0 = arith.constant 0 : index
    %c0_0 = arith.constant 0 : index
    %0 = vector.load %arg0[%c0, %c0_0] : memref<64x256xf32, #tpu.memory_space<vmem>>, vector<64x256xf32>
    %cst = arith.constant dense<0.000000e+00> : vector<64xf32>
    %1 = vector.multi_reduction <add>, %0, %cst [1] : vector<64x256xf32> to vector<64xf32>
    %2 = vector.shape_cast %1 : vector<64xf32> to vector<64x1xf32>
    %cst_1 = arith.constant 3.906250e-03 : f32
    %3 = vector.broadcast %cst_1 : f32 to vector<64x1xf32>
    %4 = arith.mulf %2, %3 : vector<64x1xf32>
    %c0_2 = arith.constant 0 : index
    %c0_3 = arith.constant 0 : index
    %5 = vector.load %arg3[%c0_2, %c0_3] : memref<2x64xf32, #tpu.memory_space<vmem>>, vector<2x64xf32>
    %c0_4 = arith.constant 0 : index
    %c0_5 = arith.constant 0 : index
    %6 = vector.load %arg1[%c0_4, %c0_5] : memref<64x2xf32, #tpu.memory_space<vmem>>, vector<64x2xf32>
    %7 = vector.broadcast %4 : vector<64x1xf32> to vector<64x2xf32>
    %8 = arith.mulf %7, %6 : vector<64x2xf32>
    %cst_6 = arith.constant dense<0.000000e+00> : vector<2x2xf32>
    %9 = tpu.matmul %5, %8, %cst_6 {dimension_numbers = #tpu.dot_dimension_numbers<[1], [0], [0], [1], [0, 0, 1, 1], [], []>} : vector<2x64xf32>, vector<64x2xf32>, vector<2x2xf32> -> vector<2x2xf32>
    %cst_7 = arith.constant 0.000000e+00 : f32
    %10 = vector.broadcast %cst_7 : f32 to vector<2x2xf32>
    %11 = arith.maximumf %9, %10 : vector<2x2xf32>
    %c0_8 = arith.constant 0 : index
    %c0_9 = arith.constant 0 : index
    %12 = vector.load %arg2[%c0_8, %c0_9] : memref<2x32xf32, #tpu.memory_space<vmem>>, vector<2x32xf32>
    %cst_10 = arith.constant dense<0.000000e+00> : vector<2x32xf32>
    %13 = tpu.matmul %11, %12, %cst_10 {dimension_numbers = #tpu.dot_dimension_numbers<[1], [0], [0], [1], [0, 0, 1, 1], [], []>} : vector<2x2xf32>, vector<2x32xf32>, vector<2x32xf32> -> vector<2x32xf32>
    %14 = arith.negf %13 : vector<2x32xf32>
    %15 = math.exp %14 : vector<2x32xf32>
    %cst_11 = arith.constant 1.000000e+00 : f32
    %16 = vector.broadcast %cst_11 : f32 to vector<2x32xf32>
    %17 = arith.addf %16, %15 : vector<2x32xf32>
    %18 = arith.divf %16, %17 : vector<2x32xf32>
    %c0_12 = arith.constant 0 : index
    %c0_13 = arith.constant 0 : index
    %19 = vector.load %arg4[%c0_12, %c0_13] : memref<64x2xf32, #tpu.memory_space<vmem>>, vector<64x2xf32>
    %cst_14 = arith.constant dense<0.000000e+00> : vector<64x32xf32>
    %20 = tpu.matmul %19, %18, %cst_14 {dimension_numbers = #tpu.dot_dimension_numbers<[1], [0], [0], [1], [0, 0, 1, 1], [], []>} : vector<64x2xf32>, vector<2x32xf32>, vector<64x32xf32> -> vector<64x32xf32>
    %c0_15 = arith.constant 0 : index
    %c0_16 = arith.constant 0 : index
    %21 = vector.load %arg5[%c0_15, %c0_16] : memref<64x32xf32, #tpu.memory_space<vmem>>, vector<64x32xf32>
    %22 = arith.mulf %20, %21 : vector<64x32xf32>
    %cst_17 = arith.constant dense<0.000000e+00> : vector<64xf32>
    %23 = vector.multi_reduction <add>, %22, %cst_17 [1] : vector<64x32xf32> to vector<64xf32>
    %24 = vector.shape_cast %23 : vector<64xf32> to vector<64x1xf32>
    %25 = vector.broadcast %24 : vector<64x1xf32> to vector<64x256xf32>
    %26 = arith.mulf %0, %25 : vector<64x256xf32>
    %c0_18 = arith.constant 0 : index
    %c0_19 = arith.constant 0 : index
    %27 = vector.load %arg6[%c0_18, %c0_19] : memref<64x256xf32, #tpu.memory_space<vmem>>, vector<64x256xf32>
    tpu.vector_store %arg6[%c0_18, %c0_19], %26 {strides = array<i32>} : memref<64x256xf32, #tpu.memory_space<vmem>>, vector<64x256xf32>,
    return
  }
}

</mosaic_0001>

<llo_original>
// kernel: se_layer.1
$region0: #{se_layer.1}
  #allocation0 [shape = 'u32[]', space=smem, size = 0x4, offset = 0x4, fixed_abs, tag = 'smem constant byte address 0x4 - core index']
  #allocation1 [shape = 'u32[144,128]{1,0:T(1,128)}', space=vmem, size = 0x12000, scoped, tag = 'internal scratch']
  %s0 = inlined_call_operand.hbm [shape: f32[64,256], index: 0, kind: input, shape index: {}]
  %s1 = inlined_call_operand.hbm [shape: f32[64,2], index: 1, kind: input, shape index: {}]
  %s2 = inlined_call_operand.hbm [shape: f32[2,32], index: 2, kind: input, shape index: {}]
  %s3 = inlined_call_operand.hbm [shape: f32[2,64], index: 3, kind: input, shape index: {}]
  %s4 = inlined_call_operand.hbm [shape: f32[64,2], index: 4, kind: input, shape index: {}]
  %s5 = inlined_call_operand.hbm [shape: f32[64,32], index: 5, kind: input, shape index: {}]
  %s6 = inlined_call_operand.hbm [shape: f32[64,256], index: 6, kind: output, shape index: {}]
  %s7 = sld [smem:[#allocation0]]
  $region58: #{se_layer.1} parent=0
    _
  %s9 = ssub.s32 1, %s7
  %s10 = scalar_select 0, %s9, %s7
  $region1: #{se_layer.1} parent=0
    #allocation2 [shape = 'u8[65536]{0}', space=vmem, size = 0x10000, scoped, tag = 'input window, operand 0, single buffered']
    #allocation3 [shape = 's32[1]{0}', space=sflag, size = 0x4, scoped, tag = 'scoped memory for se_layer.1']
    #allocation4 [shape = 's32[1]{0}', space=sflag, size = 0x4, scoped, tag = 'scoped memory for se_layer.1']
    #allocation5 [shape = 'u8[32768]{0}', space=vmem, size = 0x8000, scoped, tag = 'input window, operand 1, single buffered']
    #allocation6 [shape = 's32[1]{0}', space=sflag, size = 0x4, scoped, tag = 'scoped memory for se_layer.1']
    #allocation7 [shape = 'u8[1024]{0}', space=vmem, size = 0x400, scoped, tag = 'input window, operand 2, single buffered']
    #allocation8 [shape = 'u8[1024]{0}', space=vmem, size = 0x400, scoped, tag = 'input window, operand 3, single buffered']
    #allocation9 [shape = 's32[1]{0}', space=sflag, size = 0x4, scoped, tag = 'scoped memory for se_layer.1']
    #allocation10 [shape = 'u8[32768]{0}', space=vmem, size = 0x8000, scoped, tag = 'input window, operand 4, single buffered']
    #allocation11 [shape = 'u8[32768]{0}', space=vmem, size = 0x8000, scoped, tag = 'input window, operand 5, single buffered']
    #allocation12 [shape = 's32[1]{0}', space=sflag, size = 0x4, scoped, tag = 'scoped memory for se_layer.1']
    #allocation13 [shape = 'u8[65536]{0}', space=vmem, size = 0x10000, scoped, tag = 'output window, operand 0, single buffered']
    %11 = vsyncpa [#allocation3], 0
    %12 = vsyncpa [#allocation6], 0
    %13 = vsyncpa [#allocation9], 0
    %14 = vsyncpa [#allocation12], 0
    %15 = vsyncpa [#allocation4], 0
    // Predicated region
    $region2: #{se_layer.1} parent=1 // pred_check
      _
    $region3: #{se_layer.1} parent=1 // pred_check_branch
      %17 = sbr.rel (0) target = $region5
    $region4: #{se_layer.1} parent=1 // pred_region
      %s19 = ssub.s32 2048, 2048
      %20 = vsyncadd [#allocation3], %s19
      %s21 = sshll.u32 [#allocation2], 4
      %s22 = int_to_ptr.vmem [resolvable:$true] %s21
      %27 = dma.hbm_to_vmem [thread:$0]  %s0, 2048, %s22, [#allocation3], 256, 256, 16
    $region5: #{se_layer.1} parent=1 // pred_fallthru
      _
    // Predicated region
    $region6: #{se_layer.1} parent=1 // pred_check
      _
    $region7: #{se_layer.1} parent=1 // pred_check_branch
      %29 = sbr.rel (0) target = $region9
    $region8: #{se_layer.1} parent=1 // pred_region
      %s31 = ssub.s32 1024, 1024
      %32 = vsyncadd [#allocation6], %s31
      %s33 = sshll.u32 [#allocation5], 4
      %s34 = int_to_ptr.vmem [resolvable:$true] %s33
      %39 = dma.hbm_to_vmem [thread:$0]  %s1, 1024, %s34, [#allocation6], 128, 128, 8
    $region9: #{se_layer.1} parent=1 // pred_fallthru
      _
    // Predicated region
    $region10: #{se_layer.1} parent=1 // pred_check
      _
    $region11: #{se_layer.1} parent=1 // pred_check_branch
      %41 = sbr.rel (0) target = $region13
    $region12: #{se_layer.1} parent=1 // pred_region
      %s43 = ssub.s32 32, 32
      %44 = vsyncadd [#allocation6], %s43
      %s46 = sshll.u32 [#allocation7], 4
      %s47 = int_to_ptr.vmem [resolvable:$true] %s46
      %49 = dma.hbm_to_vmem [thread:$0]  %s2, 32, %s47, [#allocation6]
    $region13: #{se_layer.1} parent=1 // pred_fallthru
      _
    // Predicated region
    $region14: #{se_layer.1} parent=1 // pred_check
      _
    $region15: #{se_layer.1} parent=1 // pred_check_branch
      %51 = sbr.rel (0) target = $region17
    $region16: #{se_layer.1} parent=1 // pred_region
      %s53 = ssub.s32 32, 32
      %54 = vsyncadd [#allocation9], %s53
      %s56 = sshll.u32 [#allocation8], 4
      %s57 = int_to_ptr.vmem [resolvable:$true] %s56
      %59 = dma.hbm_to_vmem [thread:$0]  %s3, 32, %s57, [#allocation9]
    $region17: #{se_layer.1} parent=1 // pred_fallthru
      _
    // Predicated region
    $region18: #{se_layer.1} parent=1 // pred_check
      _
    $region19: #{se_layer.1} parent=1 // pred_check_branch
      %61 = sbr.rel (0) target = $region21
    $region20: #{se_layer.1} parent=1 // pred_region
      %s63 = ssub.s32 1024, 1024
      %64 = vsyncadd [#allocation9], %s63
      %s65 = sshll.u32 [#allocation10], 4
      %s66 = int_to_ptr.vmem [resolvable:$true] %s65
      %71 = dma.hbm_to_vmem [thread:$0]  %s4, 1024, %s66, [#allocation9], 128, 128, 8
    $region21: #{se_layer.1} parent=1 // pred_fallthru
      _
    // Predicated region
    $region22: #{se_layer.1} parent=1 // pred_check
      _
    $region23: #{se_layer.1} parent=1 // pred_check_branch
      %73 = sbr.rel (0) target = $region25
    $region24: #{se_layer.1} parent=1 // pred_region
      %s75 = ssub.s32 1024, 1024
      %76 = vsyncadd [#allocation12], %s75
      %s77 = sshll.u32 [#allocation11], 4
      %s78 = int_to_ptr.vmem [resolvable:$true] %s77
      %83 = dma.hbm_to_vmem [thread:$0]  %s5, 1024, %s78, [#allocation12], 128, 128, 8
    $region25: #{se_layer.1} parent=1 // pred_fallthru
      _
    // Predicated region
    $region26: #{se_layer.1} parent=1 // pred_check
      _
    $region27: #{se_layer.1} parent=1 // pred_check_branch
      %85 = sbr.rel (0) target = $region29
    $region28: #{se_layer.1} parent=1 // pred_region
      %86 = dma.done [#allocation3], 2048
    $region29: #{se_layer.1} parent=1 // pred_fallthru
      _
    // Predicated region
    $region30: #{se_layer.1} parent=1 // pred_check
      _
    $region31: #{se_layer.1} parent=1 // pred_check_branch
      %88 = sbr.rel (0) target = $region33
    $region32: #{se_layer.1} parent=1 // pred_region
      %89 = dma.done [#allocation6], 1024
    $region33: #{se_layer.1} parent=1 // pred_fallthru
      _
    // Predicated region
    $region34: #{se_layer.1} parent=1 // pred_check
      _
    $region35: #{se_layer.1} parent=1 // pred_check_branch
      %91 = sbr.rel (0) target = $region37
    $region36: #{se_layer.1} parent=1 // pred_region
      %92 = dma.done [#allocation6], 32
    $region37: #{se_layer.1} parent=1 // pred_fallthru
      _
    // Predicated region
    $region38: #{se_layer.1} parent=1 // pred_check
      _
    $region39: #{se_layer.1} parent=1 // pred_check_branch
      %94 = sbr.rel (0) target = $region41
    $region40: #{se_layer.1} parent=1 // pred_region
      %95 = dma.done [#allocation9], 32
    $region41: #{se_layer.1} parent=1 // pred_fallthru
      _
    // Predicated region
    $region42: #{se_layer.1} parent=1 // pred_check
      _
    $region43: #{se_layer.1} parent=1 // pred_check_branch
      %97 = sbr.rel (0) target = $region45
    $region44: #{se_layer.1} parent=1 // pred_region
      %98 = dma.done [#allocation9], 1024
    $region45: #{se_layer.1} parent=1 // pred_fallthru
      _
    // Predicated region
    $region46: #{se_layer.1} parent=1 // pred_check
      _
    $region47: #{se_layer.1} parent=1 // pred_check_branch
      %100 = sbr.rel (0) target = $region49
    $region48: #{se_layer.1} parent=1 // pred_region
      %101 = dma.done [#allocation12], 1024
    $region49: #{se_layer.1} parent=1 // pred_fallthru
      _
    %v102 = vld [vmem:[#allocation2] sm:$0xff]
    %v103 = vld [vmem:[#allocation2 + $0x8] sm:$0xff]
    %v104 = vld [vmem:[#allocation2 + $0x10] sm:$0xff]
    %v105 = vld [vmem:[#allocation2 + $0x18] sm:$0xff]
    %v106 = vld [vmem:[#allocation2 + $0x20] sm:$0xff]
    %v107 = vld [vmem:[#allocation2 + $0x28] sm:$0xff]
    %v108 = vld [vmem:[#allocation2 + $0x30] sm:$0xff]
    %v109 = vld [vmem:[#allocation2 + $0x38] sm:$0xff]
    %v110 = vld [vmem:[#allocation2 + $0x40] sm:$0xff]
    %v111 = vld [vmem:[#allocation2 + $0x48] sm:$0xff]
    %v112 = vld [vmem:[#allocation2 + $0x50] sm:$0xff]
    %v113 = vld [vmem:[#allocation2 + $0x58] sm:$0xff]
    %v114 = vld [vmem:[#allocation2 + $0x60] sm:$0xff]
    %v115 = vld [vmem:[#allocation2 + $0x68] sm:$0xff]
    %v116 = vld [vmem:[#allocation2 + $0x70] sm:$0xff]
    %v117 = vld [vmem:[#allocation2 + $0x78] sm:$0xff]
    %v118 = vadd.f32 %v102, %v103
    %119 = vadd.xlane.f32.xlu0 %v118
    %v120 = vpop.xlane.xlu0 %119
    %v121 = vadd.f32 %v104, %v105
    %122 = vadd.xlane.f32.xlu0 %v121
    %v123 = vpop.xlane.xlu0 %122
    %v124 = vadd.f32 %v106, %v107
    %125 = vadd.xlane.f32.xlu0 %v124
    %v126 = vpop.xlane.xlu0 %125
    %v127 = vadd.f32 %v108, %v109
    %128 = vadd.xlane.f32.xlu0 %v127
    %v129 = vpop.xlane.xlu0 %128
    %v130 = vadd.f32 %v110, %v111
    %131 = vadd.xlane.f32.xlu0 %v130
    %v132 = vpop.xlane.xlu0 %131
    %v133 = vadd.f32 %v112, %v113
    %134 = vadd.xlane.f32.xlu0 %v133
    %v135 = vpop.xlane.xlu0 %134
    %v136 = vadd.f32 %v114, %v115
    %137 = vadd.xlane.f32.xlu0 %v136
    %v138 = vpop.xlane.xlu0 %137
    %v139 = vadd.f32 %v116, %v117
    %140 = vadd.xlane.f32.xlu0 %v139
    %v141 = vpop.xlane.xlu0 %140
    %v142 = vmul.f32 %v120, 0.00390625
    %v143 = vmul.f32 %v123, 0.00390625
    %v144 = vmul.f32 %v126, 0.00390625
    %v145 = vmul.f32 %v129, 0.00390625
    %v146 = vmul.f32 %v132, 0.00390625
    %v147 = vmul.f32 %v135, 0.00390625
    %v148 = vmul.f32 %v138, 0.00390625
    %v149 = vmul.f32 %v141, 0.00390625
    %v150 = vld [vmem:[#allocation8] sm:$0x3]
    %v151 = vld [vmem:[#allocation5] sm:$0xff]
    %v152 = vld [vmem:[#allocation5 + $0x8] sm:$0xff]
    %v153 = vld [vmem:[#allocation5 + $0x10] sm:$0xff]
    %v154 = vld [vmem:[#allocation5 + $0x18] sm:$0xff]
    %v155 = vld [vmem:[#allocation5 + $0x20] sm:$0xff]
    %v156 = vld [vmem:[#allocation5 + $0x28] sm:$0xff]
    %v157 = vld [vmem:[#allocation5 + $0x30] sm:$0xff]
    %v158 = vld [vmem:[#allocation5 + $0x38] sm:$0xff]
    %v159 = vmul.f32 %v142, %v151
    %v160 = vmul.f32 %v143, %v152
    %v161 = vmul.f32 %v144, %v153
    %v162 = vmul.f32 %v145, %v154
    %v163 = vmul.f32 %v146, %v155
    %v164 = vmul.f32 %v147, %v156
    %v165 = vmul.f32 %v148, %v157
    %v166 = vmul.f32 %v149, %v158
    %vm167 = vcmask 523264
    %v169 = vsel %vm167, %v150, 0
    %171 = vmatprep.subr.mxu0 0.0
    %172 = vmatpush1.msra.mxu0 %v159
    %173 = vmatprep.subr.mxu0 0.0
    %174 = vmatpush1.msra.mxu0 %v160
    %175 = vmatprep.subr.mxu0 0.0
    %176 = vmatpush1.msra.mxu0 %v161
    %177 = vmatprep.subr.mxu0 0.0
    %178 = vmatpush1.msra.mxu0 %v162
    %179 = vmatprep.subr.mxu0 0.0
    %180 = vmatpush1.msra.mxu0 %v163
    %181 = vmatprep.subr.mxu0 0.0
    %182 = vmatpush1.msra.mxu0 %v164
    %183 = vmatprep.subr.mxu0 0.0
    %184 = vmatpush1.msra.mxu0 %v165
    %185 = vmatprep.subr.mxu0 0.0
    %186 = vmatpush1.msra.mxu0 %v166
    %187 = vmatprep.subr.mxu0 0.0
    %188 = vmatpush1.msra.mxu0 0.0
    %189 = vmatprep.subr.mxu0 0.0
    %190 = vmatpush1.msra.mxu0 0.0
    %191 = vmatprep.subr.mxu0 0.0
    %192 = vmatpush1.msra.mxu0 0.0
    %193 = vmatprep.subr.mxu0 0.0
    %194 = vmatpush1.msra.mxu0 0.0
    %195 = vmatprep.subr.mxu0 0.0
    %196 = vmatpush1.msra.mxu0 0.0
    %197 = vmatprep.subr.mxu0 0.0
    %198 = vmatpush1.msra.mxu0 0.0
    %199 = vmatprep.subr.mxu0 0.0
    %200 = vmatpush1.msra.mxu0 0.0
    %201 = vmatprep.subr.mxu0 0.0
    %202 = vmatpush1.msra.mxu0 0.0
    %203 = vmatprep.subr.mxu0 0.0
    %204 = vmatpush1.msra.mxu0 0.0
    %205 = vmatprep.subr.mxu0 0.0
    %206 = vmatpush1.msra.mxu0 0.0
    %207 = vmatprep.subr.mxu0 0.0
    %208 = vmatpush1.msra.mxu0 0.0
    %209 = vmatprep.subr.mxu0 0.0
    %210 = vmatpush1.msra.mxu0 0.0
    %211 = vmatprep.subr.mxu0 0.0
    %212 = vmatpush1.msra.mxu0 0.0
    %213 = vmatprep.subr.mxu0 0.0
    %214 = vmatpush1.msra.mxu0 0.0
    %215 = vmatprep.subr.mxu0 0.0
    %216 = vmatpush1.msra.mxu0 0.0
    %217 = vmatprep.subr.mxu0 0.0
    %218 = vmatpush1.msra.mxu0 0.0
    %219 = vmatprep.subr.mxu0 0.0
    %220 = vmatpush1.msra.mxu0 0.0
    %221 = vmatprep.subr.mxu0 0.0
    %222 = vmatpush1.msra.mxu0 0.0
    %223 = vmatprep.subr.mxu0 0.0
    %224 = vmatpush1.msra.mxu0 0.0
    %225 = vmatprep.subr.mxu0 0.0
    %226 = vmatpush1.msra.mxu0 0.0
    %227 = vmatprep.subr.mxu0 0.0
    %228 = vmatpush1.msra.mxu0 0.0
    %229 = vmatprep.subr.mxu0 0.0
    %230 = vmatpush1.msra.mxu0 0.0
    %231 = vmatprep.subr.mxu0 0.0
    %232 = vmatpush1.msra.mxu0 0.0
    %233 = vmatprep.subr.mxu0 0.0
    %234 = vmatpush1.msra.mxu0 0.0
    %235 = vmatprep.mubr.f32.mxu0 0.0
    %236 = vmatmul.mubr.f32.gmra.mrb[0].mxu0 %v169
    %v237 = vpop.f32.mrb[0].mxu0
    %v238 = vadd.f32 0.0, %v237
    %v239 = vpop.f32.mrb[0].mxu0
    %240 = vdwg.mxu0
    %v241 = vmax.f32 %v238, 0.0
    %v242 = vld [vmem:[#allocation7] sm:$0x3]
    %vm243 = vcmask 15360
    %v245 = vsel %vm243, %v241, 0
    %vm247 = vcmask 1041408
    %v249 = vsel %vm247, %v242, 0
    %251 = vmatprep.subr.mxu0 0.0
    %252 = vmatpush1.msra.mxu0 %v249
    %253 = vmatprep.subr.mxu0 0.0
    %254 = vmatpush1.msra.mxu0 0.0
    %255 = vmatprep.subr.mxu0 0.0
    %256 = vmatpush1.msra.mxu0 0.0
    %257 = vmatprep.subr.mxu0 0.0
    %258 = vmatpush1.msra.mxu0 0.0
    %259 = vmatprep.subr.mxu0 0.0
    %260 = vmatpush1.msra.mxu0 0.0
    %261 = vmatprep.subr.mxu0 0.0
    %262 = vmatpush1.msra.mxu0 0.0
    %263 = vmatprep.subr.mxu0 0.0
    %264 = vmatpush1.msra.mxu0 0.0
    %265 = vmatprep.subr.mxu0 0.0
    %266 = vmatpush1.msra.mxu0 0.0
    %267 = vmatprep.subr.mxu0 0.0
    %268 = vmatpush1.msra.mxu0 0.0
    %269 = vmatprep.subr.mxu0 0.0
    %270 = vmatpush1.msra.mxu0 0.0
    %271 = vmatprep.subr.mxu0 0.0
    %272 = vmatpush1.msra.mxu0 0.0
    %273 = vmatprep.subr.mxu0 0.0
    %274 = vmatpush1.msra.mxu0 0.0
    %275 = vmatprep.subr.mxu0 0.0
    %276 = vmatpush1.msra.mxu0 0.0
    %277 = vmatprep.subr.mxu0 0.0
    %278 = vmatpush1.msra.mxu0 0.0
    %279 = vmatprep.subr.mxu0 0.0
    %280 = vmatpush1.msra.mxu0 0.0
    %281 = vmatprep.subr.mxu0 0.0
    %282 = vmatpush1.msra.mxu0 0.0
    %283 = vmatprep.subr.mxu0 0.0
    %284 = vmatpush1.msra.mxu0 0.0
    %285 = vmatprep.subr.mxu0 0.0
    %286 = vmatpush1.msra.mxu0 0.0
    %287 = vmatprep.subr.mxu0 0.0
    %288 = vmatpush1.msra.mxu0 0.0
    %289 = vmatprep.subr.mxu0 0.0
    %290 = vmatpush1.msra.mxu0 0.0
    %291 = vmatprep.subr.mxu0 0.0
    %292 = vmatpush1.msra.mxu0 0.0
    %293 = vmatprep.subr.mxu0 0.0
    %294 = vmatpush1.msra.mxu0 0.0
    %295 = vmatprep.subr.mxu0 0.0
    %296 = vmatpush1.msra.mxu0 0.0
    %297 = vmatprep.subr.mxu0 0.0
    %298 = vmatpush1.msra.mxu0 0.0
    %299 = vmatprep.subr.mxu0 0.0
    %300 = vmatpush1.msra.mxu0 0.0
    %301 = vmatprep.subr.mxu0 0.0
    %302 = vmatpush1.msra.mxu0 0.0
    %303 = vmatprep.subr.mxu0 0.0
    %304 = vmatpush1.msra.mxu0 0.0
    %305 = vmatprep.subr.mxu0 0.0
    %306 = vmatpush1.msra.mxu0 0.0
    %307 = vmatprep.subr.mxu0 0.0
    %308 = vmatpush1.msra.mxu0 0.0
    %309 = vmatprep.subr.mxu0 0.0
    %310 = vmatpush1.msra.mxu0 0.0
    %311 = vmatprep.subr.mxu0 0.0
    %312 = vmatpush1.msra.mxu0 0.0
    %313 = vmatprep.subr.mxu0 0.0
    %314 = vmatpush1.msra.mxu0 0.0
    %315 = vmatprep.mubr.f32.mxu0 0.0
    %316 = vmatmul.mubr.f32.gmra.mrb[0].mxu0 %v245
    %v317 = vpop.f32.mrb[0].mxu0
    %v318 = vadd.f32 0.0, %v317
    %v319 = vpop.f32.mrb[0].mxu0
    %320 = vdwg.mxu0
    %v321 = vxor.u32 %v318, 2147483648
    %v322 = vmul.f32 %v321, 1.442695
    %v323 = vpow.pop %v322
    %v324 = vadd.f32 %v323, 1.0
    %v325 = vrcp.pop %v324
    %v326 = vmul.f32 1.0, %v325
    %v327 = vld [vmem:[#allocation10] sm:$0xff]
    %v328 = vld [vmem:[#allocation10 + $0x8] sm:$0xff]
    %v329 = vld [vmem:[#allocation10 + $0x10] sm:$0xff]
    %v330 = vld [vmem:[#allocation10 + $0x18] sm:$0xff]
    %v331 = vld [vmem:[#allocation10 + $0x20] sm:$0xff]
    %v332 = vld [vmem:[#allocation10 + $0x28] sm:$0xff]
    %v333 = vld [vmem:[#allocation10 + $0x30] sm:$0xff]
    %v334 = vld [vmem:[#allocation10 + $0x38] sm:$0xff]
    %v336 = vsel %vm243, %v327, 0
    %v339 = vsel %vm243, %v328, 0
    %v342 = vsel %vm243, %v329, 0
    %v345 = vsel %vm243, %v330, 0
    %v348 = vsel %vm243, %v331, 0
    %v351 = vsel %vm243, %v332, 0
    %v354 = vsel %vm243, %v333, 0
    %v357 = vsel %vm243, %v334, 0
    %v360 = vsel %vm247, %v326, 0
    %362 = vmatprep.subr.mxu0 0.0
    %363 = vmatpush1.msra.mxu0 %v360
    %364 = vmatprep.subr.mxu0 0.0
    %365 = vmatpush1.msra.mxu0 0.0
    %366 = vmatprep.subr.mxu0 0.0
    %367 = vmatpush1.msra.mxu0 0.0
    %368 = vmatprep.subr.mxu0 0.0
    %369 = vmatpush1.msra.mxu0 0.0
    %370 = vmatprep.subr.mxu0 0.0
    %371 = vmatpush1.msra.mxu0 0.0
    %372 = vmatprep.subr.mxu0 0.0
    %373 = vmatpush1.msra.mxu0 0.0
    %374 = vmatprep.subr.mxu0 0.0
    %375 = vmatpush1.msra.mxu0 0.0
    %376 = vmatprep.subr.mxu0 0.0
    %377 = vmatpush1.msra.mxu0 0.0
    %378 = vmatprep.subr.mxu0 0.0
    %379 = vmatpush1.msra.mxu0 0.0
    %380 = vmatprep.subr.mxu0 0.0
    %381 = vmatpush1.msra.mxu0 0.0
    %382 = vmatprep.subr.mxu0 0.0
    %383 = vmatpush1.msra.mxu0 0.0
    %384 = vmatprep.subr.mxu0 0.0
    %385 = vmatpush1.msra.mxu0 0.0
    %386 = vmatprep.subr.mxu0 0.0
    %387 = vmatpush1.msra.mxu0 0.0
    %388 = vmatprep.subr.mxu0 0.0
    %389 = vmatpush1.msra.mxu0 0.0
    %390 = vmatprep.subr.mxu0 0.0
    %391 = vmatpush1.msra.mxu0 0.0
    %392 = vmatprep.subr.mxu0 0.0
    %393 = vmatpush1.msra.mxu0 0.0
    %394 = vmatprep.subr.mxu0 0.0
    %395 = vmatpush1.msra.mxu0 0.0
    %396 = vmatprep.subr.mxu0 0.0
    %397 = vmatpush1.msra.mxu0 0.0
    %398 = vmatprep.subr.mxu0 0.0
    %399 = vmatpush1.msra.mxu0 0.0
    %400 = vmatprep.subr.mxu0 0.0
    %401 = vmatpush1.msra.mxu0 0.0
    %402 = vmatprep.subr.mxu0 0.0
    %403 = vmatpush1.msra.mxu0 0.0
    %404 = vmatprep.subr.mxu0 0.0
    %405 = vmatpush1.msra.mxu0 0.0
    %406 = vmatprep.subr.mxu0 0.0
    %407 = vmatpush1.msra.mxu0 0.0
    %408 = vmatprep.subr.mxu0 0.0
    %409 = vmatpush1.msra.mxu0 0.0
    %410 = vmatprep.subr.mxu0 0.0
    %411 = vmatpush1.msra.mxu0 0.0
    %412 = vmatprep.subr.mxu0 0.0
    %413 = vmatpush1.msra.mxu0 0.0
    %414 = vmatprep.subr.mxu0 0.0
    %415 = vmatpush1.msra.mxu0 0.0
    %416 = vmatprep.subr.mxu0 0.0
    %417 = vmatpush1.msra.mxu0 0.0
    %418 = vmatprep.subr.mxu0 0.0
    %419 = vmatpush1.msra.mxu0 0.0
    %420 = vmatprep.subr.mxu0 0.0
    %421 = vmatpush1.msra.mxu0 0.0
    %422 = vmatprep.subr.mxu0 0.0
    %423 = vmatpush1.msra.mxu0 0.0
    %424 = vmatprep.subr.mxu0 0.0
    %425 = vmatpush1.msra.mxu0 0.0
    %426 = vmatprep.mubr.f32.mxu0 0.0
    %427 = vmatmul.mubr.f32.gmra.mrb[0].mxu0 %v336
    %v428 = vpop.f32.mrb[0].mxu0
    %v429 = vadd.f32 0.0, %v428
    %v430 = vpop.f32.mrb[0].mxu0
    %431 = vmatprep.mubr.f32.mxu0 0.0
    %432 = vmatmul.mubr.f32.gmra.mrb[0].mxu0 %v339
    %v433 = vpop.f32.mrb[0].mxu0
    %v434 = vadd.f32 0.0, %v433
    %v435 = vpop.f32.mrb[0].mxu0
    %436 = vmatprep.mubr.f32.mxu0 0.0
    %437 = vmatmul.mubr.f32.gmra.mrb[0].mxu0 %v342
    %v438 = vpop.f32.mrb[0].mxu0
    %v439 = vadd.f32 0.0, %v438
    %v440 = vpop.f32.mrb[0].mxu0
    %441 = vmatprep.mubr.f32.mxu0 0.0
    %442 = vmatmul.mubr.f32.gmra.mrb[0].mxu0 %v345
    %v443 = vpop.f32.mrb[0].mxu0
    %v444 = vadd.f32 0.0, %v443
    %v445 = vpop.f32.mrb[0].mxu0
    %446 = vmatprep.mubr.f32.mxu0 0.0
    %447 = vmatmul.mubr.f32.gmra.mrb[0].mxu0 %v348
    %v448 = vpop.f32.mrb[0].mxu0
    %v449 = vadd.f32 0.0, %v448
    %v450 = vpop.f32.mrb[0].mxu0
    %451 = vmatprep.mubr.f32.mxu0 0.0
    %452 = vmatmul.mubr.f32.gmra.mrb[0].mxu0 %v351
    %v453 = vpop.f32.mrb[0].mxu0
    %v454 = vadd.f32 0.0, %v453
    %v455 = vpop.f32.mrb[0].mxu0
    %456 = vmatprep.mubr.f32.mxu0 0.0
    %457 = vmatmul.mubr.f32.gmra.mrb[0].mxu0 %v354
    %v458 = vpop.f32.mrb[0].mxu0
    %v459 = vadd.f32 0.0, %v458
    %v460 = vpop.f32.mrb[0].mxu0
    %461 = vmatprep.mubr.f32.mxu0 0.0
    %462 = vmatmul.mubr.f32.gmra.mrb[0].mxu0 %v357
    %v463 = vpop.f32.mrb[0].mxu0
    %v464 = vadd.f32 0.0, %v463
    %v465 = vpop.f32.mrb[0].mxu0
    %466 = vdwg.mxu0
    %v467 = vld [vmem:[#allocation11] sm:$0xff]
    %v468 = vld [vmem:[#allocation11 + $0x8] sm:$0xff]
    %v469 = vld [vmem:[#allocation11 + $0x10] sm:$0xff]
    %v470 = vld [vmem:[#allocation11 + $0x18] sm:$0xff]
    %v471 = vld [vmem:[#allocation11 + $0x20] sm:$0xff]
    %v472 = vld [vmem:[#allocation11 + $0x28] sm:$0xff]
    %v473 = vld [vmem:[#allocation11 + $0x30] sm:$0xff]
    %v474 = vld [vmem:[#allocation11 + $0x38] sm:$0xff]
    %v475 = vmul.f32 %v429, %v467
    %v476 = vmul.f32 %v434, %v468
    %v477 = vmul.f32 %v439, %v469
    %v478 = vmul.f32 %v444, %v470
    %v479 = vmul.f32 %v449, %v471
    %v480 = vmul.f32 %v454, %v472
    %v481 = vmul.f32 %v459, %v473
    %v482 = vmul.f32 %v464, %v474
    %vm483 = vcmask 261120
    %v484 = vsel %vm483, %v475, 0.0
    %485 = vadd.xlane.f32.xlu0 %v484
    %v486 = vpop.xlane.xlu0 %485
    %v487 = vsel %vm483, %v476, 0.0
    %488 = vadd.xlane.f32.xlu0 %v487
    %v489 = vpop.xlane.xlu0 %488
    %v490 = vsel %vm483, %v477, 0.0
    %491 = vadd.xlane.f32.xlu0 %v490
    %v492 = vpop.xlane.xlu0 %491
    %v493 = vsel %vm483, %v478, 0.0
    %494 = vadd.xlane.f32.xlu0 %v493
    %v495 = vpop.xlane.xlu0 %494
    %v496 = vsel %vm483, %v479, 0.0
    %497 = vadd.xlane.f32.xlu0 %v496
    %v498 = vpop.xlane.xlu0 %497
    %v499 = vsel %vm483, %v480, 0.0
    %500 = vadd.xlane.f32.xlu0 %v499
    %v501 = vpop.xlane.xlu0 %500
    %v502 = vsel %vm483, %v481, 0.0
    %503 = vadd.xlane.f32.xlu0 %v502
    %v504 = vpop.xlane.xlu0 %503
    %v505 = vsel %vm483, %v482, 0.0
    %506 = vadd.xlane.f32.xlu0 %v505
    %v507 = vpop.xlane.xlu0 %506
    %v508 = vmul.f32 %v102, %v486
    %v509 = vmul.f32 %v103, %v486
    %v510 = vmul.f32 %v104, %v489
    %v511 = vmul.f32 %v105, %v489
    %v512 = vmul.f32 %v106, %v492
    %v513 = vmul.f32 %v107, %v492
    %v514 = vmul.f32 %v108, %v495
    %v515 = vmul.f32 %v109, %v495
    %v516 = vmul.f32 %v110, %v498
    %v517 = vmul.f32 %v111, %v498
    %v518 = vmul.f32 %v112, %v501
    %v519 = vmul.f32 %v113, %v501
    %v520 = vmul.f32 %v114, %v504
    %v521 = vmul.f32 %v115, %v504
    %v522 = vmul.f32 %v116, %v507
    %v523 = vmul.f32 %v117, %v507
    %524 = vst [vmem:[#allocation13] sm:$0xff] %v508
    %525 = vst [vmem:[#allocation13 + $0x8] sm:$0xff] %v509
    %526 = vst [vmem:[#allocation13 + $0x10] sm:$0xff] %v510
    %527 = vst [vmem:[#allocation13 + $0x18] sm:$0xff] %v511
    %528 = vst [vmem:[#allocation13 + $0x20] sm:$0xff] %v512
    %529 = vst [vmem:[#allocation13 + $0x28] sm:$0xff] %v513
    %530 = vst [vmem:[#allocation13 + $0x30] sm:$0xff] %v514
    %531 = vst [vmem:[#allocation13 + $0x38] sm:$0xff] %v515
    %532 = vst [vmem:[#allocation13 + $0x40] sm:$0xff] %v516
    %533 = vst [vmem:[#allocation13 + $0x48] sm:$0xff] %v517
    %534 = vst [vmem:[#allocation13 + $0x50] sm:$0xff] %v518
    %535 = vst [vmem:[#allocation13 + $0x58] sm:$0xff] %v519
    %536 = vst [vmem:[#allocation13 + $0x60] sm:$0xff] %v520
    %537 = vst [vmem:[#allocation13 + $0x68] sm:$0xff] %v521
    %538 = vst [vmem:[#allocation13 + $0x70] sm:$0xff] %v522
    %539 = vst [vmem:[#allocation13 + $0x78] sm:$0xff] %v523
    // Predicated region
    $region50: #{se_layer.1} parent=1 // pred_check
      _
    $region51: #{se_layer.1} parent=1 // pred_check_branch
      %541 = sbr.rel (0) target = $region53
    $region52: #{se_layer.1} parent=1 // pred_region
      %s543 = ssub.s32 2048, 2048
      %544 = vsyncadd [#allocation4], %s543
      %s545 = sshll.u32 [#allocation13], 4
      %s546 = int_to_ptr.vmem [resolvable:$true] %s545
      %551 = dma.vmem_to_hbm [thread:$0]  %s546, 2048, %s6, [#allocation4], 256, 256, 16
    $region53: #{se_layer.1} parent=1 // pred_fallthru
      _
    // Predicated region
    $region54: #{se_layer.1} parent=1 // pred_check
      _
    $region55: #{se_layer.1} parent=1 // pred_check_branch
      %553 = sbr.rel (0) target = $region57
    $region56: #{se_layer.1} parent=1 // pred_region
      %554 = dma.done [#allocation4], 2048
    $region57: #{se_layer.1} parent=1 // pred_fallthru
      _
    %555 = vsyncpa [#allocation3], 1
    %556 = vsyncpa [#allocation6], 1
    %557 = vsyncpa [#allocation9], 1
    %558 = vsyncpa [#allocation12], 1
    %559 = vsyncpa [#allocation4], 1

</llo_original>
